<compile_context>
chip_gen: v6e
topology: v6e:2x2x1
jax: 0.10.0
libtpu: 0.0.40
codegen_flags: <defaults>
</compile_context>

<pallas_src>
import functools

import jax
import jax.numpy as jnp
from jax.experimental import pallas as pl
from jax.experimental.pallas import tpu as pltpu


_MXU_MIN_CHANNELS = 32   # below this the 1x1 "conv" runs on the VPU/XLU, not the MXU


def _vmem_config():
    """(vmem_limit_bytes, block_budget_bytes) derived from the chip's physical VMEM."""
    try:
        cap = int(pltpu.get_tpu_info().vmem_capacity_bytes)
        if cap <= 0:
            raise ValueError
    except Exception:
        cap = 64 * 1024 * 1024            # conservative fallback (v7x per-TC size)
    limit = min(96 * 1024 * 1024, (cap * 3) // 4)   # 96 MiB on 128-MiB parts, 48 MiB on v7x
    budget = limit // 2                              # bytes for 2 x (in + out) streamed blocks
    return limit, budget


def _pick_group(batch, channels, hw, itemsize, block_budget):
    """Samples per grid step: largest group fitting the double-buffered in+out budget,
    while keeping >= 2 grid steps so the DMA stream overlaps compute."""
    per_sample = max(1, channels * hw * itemsize)
    g = max(1, block_budget // (4 * per_sample))     # 2 buffers x (in + out)
    g = min(g, batch)
    if batch > 1:
        g = min(g, pl.cdiv(batch, 2))                # at least 2 steps for pipelining
    return max(1, g)


def _ca_kernel(x_ref, wt_ref, o_ref, *, inv_hw, use_mxu):
    # x_ref: (G, C, HWp) stream dtype   wt_ref: (C_in, C_out) f32   o_ref: (G, C, HWp)
    x = x_ref[...]

    # Global average pool over the spatial (lane) axis, accumulated in f32 without
    # materializing an f32 copy of the block. Padded lanes are zero, so the sum is
    # exact and 1/HW_valid (inv_hw) gives the true mean.
    y = jnp.sum(x, axis=-1, dtype=jnp.float32) * inv_hw          # (G, C)

    wt = wt_ref[...]                                             # (C_in, C_out), already f32
    if use_mxu:
        # Standard (last, first) contraction: feeds the MXU with no per-step relayout.
        z = jax.lax.dot_general(
            y, wt,
            dimension_numbers=(((1,), (0,)), ((), ())),
            preferred_element_type=jnp.float32,
        )                                                        # (G, C_out)
    else:
        # Tiny channel count: a padded MXU tile is pure latency; do the contraction on
        # the VPU (broadcast multiply) + reduce. z[g, co] = sum_ci y[g, ci] * wt[ci, co]
        z = jnp.sum(y[:, :, None] * wt[None, :, :], axis=1)      # (G, C_out)

    # Sigmoid gate, then scale the block in the stream dtype (bf16 stays bf16 on
    # v6e/v7x; f32 path is unchanged). scale in (0,1) -> numerically benign.
    scale = jax.nn.sigmoid(z).astype(x.dtype)                    # (G, C)
    o_ref[...] = x * scale[:, :, None]


def ca_layer(x_nchw, weight):
    """x_nchw: (B, C, H, W); weight: (C_out, C_in) squeezed 1x1-conv kernel (bias=False)."""
    B, C, H, W = x_nchw.shape
    HW = H * W
    itemsize = jnp.dtype(x_nchw.dtype).itemsize

    # Lane-dense spatial axis: pad HW up to a multiple of 128 if needed (zero pad);
    # fold 1/HW_valid into the pooling mean inside the kernel.
    HW_pad = HW if HW % 128 == 0 else ((HW + 127) // 128) * 128
    x_flat = x_nchw.reshape(B, C, HW)
    if HW_pad != HW:
        x_flat = jnp.pad(x_flat, ((0, 0), (0, 0), (0, HW_pad - HW)))

    vmem_limit, block_budget = _vmem_config()
    G = _pick_group(B, C, HW_pad, itemsize, block_budget)
    num_blocks = pl.cdiv(B, G)

    # v7x: the "parallel" batch axis shards across 2 TensorCores -> prefer an even
    # number of grid steps so neither core takes an extra step.
    if num_blocks > 1 and num_blocks % 2 == 1:
        g_alt = max(1, pl.cdiv(B, num_blocks + 1))
        if pl.cdiv(B, g_alt) % 2 == 0:
            G = g_alt
            num_blocks = pl.cdiv(B, G)

    # Pre-transpose + pre-cast the weight once in the wrapper (tiny (C, C) tensor).
    w_t = jnp.transpose(weight).astype(jnp.float32)              # (C_in, C_out)

    kernel = functools.partial(
        _ca_kernel,
        inv_hw=float(1.0 / HW),
        use_mxu=(C >= _MXU_MIN_CHANNELS),
    )

    # Memory-bound: ~2 streams of x, tiny flops. Help XLA schedule around it.
    cost = pl.CostEstimate(
        flops=2 * B * C * HW_pad + 2 * B * C * C,
        transcendentals=B * C,
        bytes_accessed=2 * B * C * HW_pad * itemsize + C * C * 4,
    )

    out_flat = pl.pallas_call(
        kernel,
        out_shape=jax.ShapeDtypeStruct((B, C, HW_pad), x_nchw.dtype),
        grid=(num_blocks,),
        in_specs=[
            pl.BlockSpec((G, C, HW_pad), lambda i: (i, 0, 0)),   # per-group x slab
            pl.BlockSpec((C, C), lambda i: (0, 0)),              # weight: resident, no re-DMA
        ],
        out_specs=pl.BlockSpec((G, C, HW_pad), lambda i: (i, 0, 0)),
        compiler_params=pltpu.CompilerParams(
            dimension_semantics=("parallel",),                   # independent over batch groups
            vmem_limit_bytes=vmem_limit,
        ),
        cost_estimate=cost,
    )(x_flat, w_t)

    if HW_pad != HW:
        out_flat = out_flat[:, :, :HW]
    return out_flat.reshape(B, C, H, W)


def _reference(x_nchw, weight):
    y = jnp.mean(x_nchw, axis=(2, 3))                            # (B, C)
    z = jax.nn.sigmoid(jnp.einsum("oc,bc->bo", weight, y))       # (B, C)
    return x_nchw * z[:, :, None, None]


if __name__ == "__main__":
    key = jax.random.PRNGKey(0)
    kx, kw, kx2 = jax.random.split(key, 3)

    # Primary test: f32 stream, lane-dense spatial (HW = 256).
    B, C, H, W = 2, 4, 16, 16
    x = jax.random.normal(kx, (B, C, H, W), dtype=jnp.float32)
    # Deterministic 1x1 conv weight (channel -> channel, bias=False), as in CALayer.conv_du.
    weight = 0.1 * jax.random.normal(kw, (C, C), dtype=jnp.float32)

    out = jax.block_until_ready(ca_layer(x, weight))
    ref = _reference(x, weight)
    assert jnp.allclose(out, ref, atol=1e-5, rtol=1e-5), "f32 mismatch vs reference"

    # Secondary test: bf16 stream + HW not a multiple of 128 (exercises the pad path
    # and the bf16 epilogue multiply).
    xb = jax.random.normal(kx2, (B, C, 10, 10), dtype=jnp.bfloat16)
    outb = jax.block_until_ready(ca_layer(xb, weight))
    refb = _reference(xb.astype(jnp.float32), weight)
    assert jnp.allclose(outb.astype(jnp.float32), refb, atol=2e-2, rtol=2e-2), \
        "bf16 mismatch vs reference"

    print("KERNEL_OK")
</pallas_src>

<mosaic_0001>
module attributes {stable_mosaic.version = 11 : i64} {
  func.func @_ca_kernel(%arg0: i32, %arg1: memref<1x4x256xf32, #tpu.memory_space<vmem>>, %arg2: memref<4x4xf32, #tpu.memory_space<vmem>>, %arg3: memref<1x4x256xf32, #tpu.memory_space<vmem>>) attributes {dimension_semantics = [#tpu.dimension_semantics<parallel>], iteration_bounds = array<i64: 2>, scalar_prefetch = 0 : i64, scratch_operands = 0 : i64, tpu.core_type = #tpu.core_type<tc>, window_params = [{transform_indices = @transform_0, window_bounds = array<i64: 1, 4, 256>}, {pipeline_mode = #tpu.pipeline_mode<synchronous>, transform_indices = @transform_1, window_bounds = array<i64: 4, 4>}, {transform_indices = @transform_2, window_bounds = array<i64: 1, 4, 256>}]} {
    %c0 = arith.constant 0 : index
    %c0_0 = arith.constant 0 : index
    %c0_1 = arith.constant 0 : index
    %0 = vector.load %arg1[%c0, %c0_0, %c0_1] : memref<1x4x256xf32, #tpu.memory_space<vmem>>, vector<1x4x256xf32>
    %cst = arith.constant dense<0.000000e+00> : vector<1x4xf32>
    %1 = vector.multi_reduction <add>, %0, %cst [2] : vector<1x4x256xf32> to vector<1x4xf32>
    %cst_2 = arith.constant 3.906250e-03 : f32
    %2 = vector.broadcast %cst_2 : f32 to vector<1x4xf32>
    %3 = arith.mulf %1, %2 : vector<1x4xf32>
    %c0_3 = arith.constant 0 : index
    %c0_4 = arith.constant 0 : index
    %4 = vector.load %arg2[%c0_3, %c0_4] : memref<4x4xf32, #tpu.memory_space<vmem>>, vector<4x4xf32>
    %5 = vector.shape_cast %3 : vector<1x4xf32> to vector<1x4x1xf32>
    %6 = vector.shape_cast %4 : vector<4x4xf32> to vector<1x4x4xf32>
    %7 = vector.broadcast %5 : vector<1x4x1xf32> to vector<1x4x4xf32>
    %8 = arith.mulf %7, %6 : vector<1x4x4xf32>
    %cst_5 = arith.constant dense<0.000000e+00> : vector<1x4xf32>
    %9 = vector.multi_reduction <add>, %8, %cst_5 [1] : vector<1x4x4xf32> to vector<1x4xf32>
    %10 = arith.negf %9 : vector<1x4xf32>
    %11 = math.exp %10 : vector<1x4xf32>
    %cst_6 = arith.constant 1.000000e+00 : f32
    %12 = vector.broadcast %cst_6 : f32 to vector<1x4xf32>
    %13 = arith.addf %12, %11 : vector<1x4xf32>
    %14 = arith.divf %12, %13 : vector<1x4xf32>
    %15 = vector.shape_cast %14 : vector<1x4xf32> to vector<1x4x1xf32>
    %16 = vector.broadcast %15 : vector<1x4x1xf32> to vector<1x4x256xf32>
    %17 = arith.mulf %0, %16 : vector<1x4x256xf32>
    %c0_7 = arith.constant 0 : index
    %c0_8 = arith.constant 0 : index
    %c0_9 = arith.constant 0 : index
    %18 = vector.load %arg3[%c0_7, %c0_8, %c0_9] : memref<1x4x256xf32, #tpu.memory_space<vmem>>, vector<1x4x256xf32>
    tpu.vector_store %arg3[%c0_7, %c0_8, %c0_9], %17 {strides = array<i32>} : memref<1x4x256xf32, #tpu.memory_space<vmem>>, vector<1x4x256xf32>,
    return
  }
  func.func @transform_0(%arg0: i32) -> (i32, i32, i32) {
    %c0_i32 = arith.constant 0 : i32
    %c0_i32_0 = arith.constant 0 : i32
    %c0_i32_1 = arith.constant 0 : i32
    return %arg0, %c0_i32, %c0_i32_0 : i32, i32, i32
  }
  func.func @transform_1(%arg0: i32) -> (i32, i32) {
    %c0_i32 = arith.constant 0 : i32
    %c0_i32_0 = arith.constant 0 : i32
    %c0_i32_1 = arith.constant 0 : i32
    return %c0_i32, %c0_i32_0 : i32, i32
  }
  func.func @transform_2(%arg0: i32) -> (i32, i32, i32) {
    %c0_i32 = arith.constant 0 : i32
    %c0_i32_0 = arith.constant 0 : i32
    %c0_i32_1 = arith.constant 0 : i32
    return %arg0, %c0_i32, %c0_i32_0 : i32, i32, i32
  }
}

</mosaic_0001>

<llo_original>
// kernel: tpu_custom_call.1
$region0: #{tpu_custom_call.1}
  #allocation0 [shape = 'u32[]', space=smem, size = 0x4, offset = 0x4, fixed_abs, tag = 'smem constant byte address 0x4 - core index']
  #allocation1 [shape = 'u32[144,128]{1,0:T(1,128)}', space=vmem, size = 0x12000, scoped, tag = 'internal scratch']
  %s0 = inlined_call_operand.hbm [shape: f32[2,4,256], index: 0, kind: input, shape index: {}]
  %s1 = inlined_call_operand.hbm [shape: f32[4,4], index: 1, kind: input, shape index: {}]
  %s2 = inlined_call_operand.hbm [shape: f32[2,4,256], index: 2, kind: output, shape index: {}]
  %s3 = sld [smem:[#allocation0]]
  $region49: #{tpu_custom_call.1} parent=0
    _
  %s5 = ssub.s32 1, %s3
  %s6 = scalar_select 0, %s5, %s3
  $region1: #{tpu_custom_call.1} parent=0
    #allocation2 [shape = 'u8[8192]{0}', space=vmem, size = 0x2000, scoped, tag = 'input window, operand 0']
    #allocation3 [shape = 's32[2]{0}', space=sflag, size = 0x8, scoped, tag = 'scoped memory for tpu_custom_call.1']
    #allocation4 [shape = 's32[2]{0}', space=sflag, size = 0x8, scoped, tag = 'scoped memory for tpu_custom_call.1']
    #allocation5 [shape = 'u8[2048]{0}', space=vmem, size = 0x800, scoped, tag = 'input window, operand 1, single buffered']
    #allocation6 [shape = 's32[1]{0}', space=sflag, size = 0x4, scoped, tag = 'scoped memory for tpu_custom_call.1']
    #allocation7 [shape = 'u8[8192]{0}', space=vmem, size = 0x2000, scoped, tag = 'output window, operand 0']
    %7 = vsyncpa [#allocation3], 0
    %s8 = scalar_lea.sflag [#allocation3], 1
    %9 = vsyncpa %s8, 0
    %10 = vsyncpa [#allocation6], 0
    %11 = vsyncpa [#allocation4], 0
    %s12 = scalar_lea.sflag [#allocation4], 1
    %13 = vsyncpa %s12, 0
    loop: start=0, step=1, limit=4
    $region2: #{tpu_custom_call.1} parent=1 // loop_pre_header
      _
    $region3: #{tpu_custom_call.1} parent=1 // loop_header
      %s15 = sphi 0, %s19
      %p16 = scmp.ge.s32.totalorder %s15, 4
      %s25 = sphi 0, %s27
      %s28 = sphi 0, %s25
      %s29 = sphi 0, %s28
      %s45 = sphi 0, %s29
      %s49 = sphi 0, %s49
      %s51 = sphi 0, %s49
      %s52 = sphi 0, %s51
      %s66 = sphi 0, %s52
      %s72 = sphi 0, %s74
      %s75 = sphi 0, %s72
      %s76 = sphi 0, %s75
      %s92 = sphi 0, %s76
    $region4: #{tpu_custom_call.1} parent=1 // loop_header_branch
      %18 = sbr.rel (%p16) target = $region8
    $region5: #{tpu_custom_call.1} parent=1 // loop_body
      %s20 = ssub.s32 %s15, 1
      %s21 = ssub.s32 %s15, 2
      %s22 = sadd.s32 %s15, 1
      %s23 = ssub.s32 %s15, %s22
      %p24 = scmp.eq.s32.totalorder %s23, 0
      %s26 = sadd.s32 %s25, 1
      %s27 = scalar_select %p24, %s25, %s26
      %p30 = pneg %p24
      %p31 = scmp.eq.s32.totalorder %s15, 1
      %p32 = por %p30, %p31
      %p33 = scmp.ne.s32.totalorder %s25, %s28
      %p34 = scmp.eq.s32.totalorder %s15, 0
      %p35 = por %p33, %p34
      %p36 = scmp.ne.s32.totalorder %s25, %s28
      %p37 = scmp.eq.s32.totalorder %s20, 1
      %p38 = por %p36, %p37
      %p39 = scmp.ne.s32.totalorder %s28, %s29
      %p40 = scmp.eq.s32.totalorder %s20, 0
      %p41 = por %p39, %p40
      %p42 = scmp.ne.s32.totalorder %s28, %s29
      %p43 = scmp.eq.s32.totalorder %s21, 1
      %p44 = por %p42, %p43
      %p46 = scmp.ne.s32.totalorder %s29, %s45
      %p47 = scmp.eq.s32.totalorder %s21, 0
      %p48 = por %p46, %p47
      %s50 = sadd.s32 %s49, 1
      %p53 = scmp.eq.s32.totalorder %s15, 1
      %p54 = scmp.ne.s32.totalorder %s49, %s51
      %p55 = scmp.eq.s32.totalorder %s15, 0
      %p56 = por %p54, %p55
      %p57 = scmp.ne.s32.totalorder %s49, %s51
      %p58 = scmp.eq.s32.totalorder %s20, 1
      %p59 = por %p57, %p58
      %p60 = scmp.ne.s32.totalorder %s51, %s52
      %p61 = scmp.eq.s32.totalorder %s20, 0
      %p62 = por %p60, %p61
      %p63 = scmp.ne.s32.totalorder %s51, %s52
      %p64 = scmp.eq.s32.totalorder %s21, 1
      %p65 = por %p63, %p64
      %p67 = scmp.ne.s32.totalorder %s52, %s66
      %p68 = scmp.eq.s32.totalorder %s21, 0
      %p69 = por %p67, %p68
      %s70 = ssub.s32 %s15, %s22
      %p71 = scmp.eq.s32.totalorder %s70, 0
      %s73 = sadd.s32 %s72, 1
      %s74 = scalar_select %p71, %s72, %s73
      %p77 = pneg %p71
      %p78 = scmp.eq.s32.totalorder %s15, 1
      %p79 = por %p77, %p78
      %p80 = scmp.ne.s32.totalorder %s72, %s75
      %p81 = scmp.eq.s32.totalorder %s15, 0
      %p82 = por %p80, %p81
      %p83 = scmp.ne.s32.totalorder %s72, %s75
      %p84 = scmp.eq.s32.totalorder %s20, 1
      %p85 = por %p83, %p84
      %p86 = scmp.ne.s32.totalorder %s75, %s76
      %p87 = scmp.eq.s32.totalorder %s20, 0
      %p88 = por %p86, %p87
      %p89 = scmp.ne.s32.totalorder %s75, %s76
      %p90 = scmp.eq.s32.totalorder %s21, 1
      %p91 = por %p89, %p90
      %p93 = scmp.ne.s32.totalorder %s76, %s92
      %p94 = scmp.eq.s32.totalorder %s21, 0
      %p95 = por %p93, %p94
      %p96 = scmp.le.s32.totalorder 1, %s15
      %p97 = scmp.lt.s32.totalorder %s15, 3
      %p98 = pnand %p96, %p97
      %p99 = pneg %p98
      // Predicated region
      $region9: #{tpu_custom_call.1} parent=5 // pred_check
        _
      $region10: #{tpu_custom_call.1} parent=5 // pred_check_branch
        %101 = sbr.rel (%p98) target = $region12
      $region11: #{tpu_custom_call.1} parent=5 // pred_region
        %s102 = ssub.s32 %s15, 1
        // Predicated region
        $region13: #{tpu_custom_call.1} parent=11 // pred_check
          %p103 = pneg %p62
        $region14: #{tpu_custom_call.1} parent=11 // pred_check_branch
          %105 = sbr.rel (%p103) target = $region16
        $region15: #{tpu_custom_call.1} parent=11 // pred_region
          %s107 = ssub.s32 64, 64
          %108 = vsyncadd [#allocation6], %s107
          %s110 = sshll.u32 [#allocation5], 4
          %s111 = int_to_ptr.vmem [resolvable:$true] %s110
          %113 = dma.hbm_to_vmem [thread:$0]  %s1, 64, %s111, [#allocation6]
        $region16: #{tpu_custom_call.1} parent=11 // pred_fallthru
          _
      $region12: #{tpu_custom_call.1} parent=5 // pred_fallthru
        _
      %p114 = scmp.lt.s32.totalorder %s15, 2
      // Predicated region
      $region17: #{tpu_custom_call.1} parent=5 // pred_check
        %p115 = pneg %p114
      $region18: #{tpu_custom_call.1} parent=5 // pred_check_branch
        %117 = sbr.rel (%p115) target = $region20
      $region19: #{tpu_custom_call.1} parent=5 // pred_region
        // Predicated region
        $region21: #{tpu_custom_call.1} parent=19 // pred_check
          %p118 = pneg %p35
        $region22: #{tpu_custom_call.1} parent=19 // pred_check_branch
          %120 = sbr.rel (%p118) target = $region24
        $region23: #{tpu_custom_call.1} parent=19 // pred_region
          %s121 = sand.u32 %s25, 1
          %s122 = scalar_lea.sflag [#allocation3], %s121
          %s123 = sand.u32 %s25, 1
          %s124 = smul.addr %s123, 8
          %s125 = scalar_lea.vmem [#allocation2], %s124
          %s127 = ssub.s32 128, 128
          %128 = vsyncadd %s122, %s127
          %s129 = smul.addr %s15, 2
          %s130 = smul.addr %s129, 64
          %s131 = scalar_lea.hbm %s0, %s130
          %s133 = sshll.u32 %s125, 4
          %s134 = int_to_ptr.vmem [resolvable:$true] %s133
          %136 = dma.hbm_to_vmem [thread:$0]  %s131, 128, %s134, %s122
        $region24: #{tpu_custom_call.1} parent=19 // pred_fallthru
          _
      $region20: #{tpu_custom_call.1} parent=5 // pred_fallthru
        _
      %p137 = scmp.le.s32.totalorder 1, %s15
      %p138 = scmp.lt.s32.totalorder %s15, 3
      %p139 = pnand %p137, %p138
      %p140 = pneg %p139
      // Predicated region
      $region25: #{tpu_custom_call.1} parent=5 // pred_check
        _
      $region26: #{tpu_custom_call.1} parent=5 // pred_check_branch
        %142 = sbr.rel (%p139) target = $region28
      $region27: #{tpu_custom_call.1} parent=5 // pred_region
        %s143 = ssub.s32 %s15, 1
        %s144 = sand.u32 %s28, 1
        %s145 = scalar_lea.sflag [#allocation3], %s144
        %s146 = sand.u32 %s28, 1
        %s147 = smul.addr %s146, 8
        %s148 = scalar_lea.vmem [#allocation2], %s147
        // Predicated region
        $region29: #{tpu_custom_call.1} parent=27 // pred_check
          %p149 = pneg %p41
        $region30: #{tpu_custom_call.1} parent=27 // pred_check_branch
          %151 = sbr.rel (%p149) target = $region32
        $region31: #{tpu_custom_call.1} parent=27 // pred_region
          %152 = dma.done %s145, 128
        $region32: #{tpu_custom_call.1} parent=27 // pred_fallthru
          _
        // Predicated region
        $region33: #{tpu_custom_call.1} parent=27 // pred_check
          %p153 = pneg %p62
        $region34: #{tpu_custom_call.1} parent=27 // pred_check_branch
          %155 = sbr.rel (%p153) target = $region36
        $region35: #{tpu_custom_call.1} parent=27 // pred_region
          %156 = dma.done [#allocation6], 64
        $region36: #{tpu_custom_call.1} parent=27 // pred_fallthru
          _
        %s157 = sand.u32 %s28, 1
        %s158 = scalar_lea.sflag [#allocation3], %s157
        %s159 = sand.u32 %s28, 1
        %s160 = smul.addr %s159, 8
        %s161 = scalar_lea.vmem [#allocation2], %s160
        %p162 = pneg %p41
        %p163 = pneg %p38
        %p164 = pneg %p62
        %p165 = pneg %p59
        %p166 = pneg %p88
        %p167 = pneg %p85
        %s168 = sand.u32 %s75, 1
        %s169 = scalar_lea.sflag [#allocation4], %s168
        %s170 = sand.u32 %s75, 1
        %s171 = smul.addr %s170, 8
        %s172 = scalar_lea.vmem [#allocation7], %s171
        %v173 = vld [vmem:[%s148] sm:$0xff]
        %v175 = vcombine.high %v173, %v173
        %vm177 = vcmask 1043456
        %v178 = vsel %vm177, %v173, 0.0
        %v179 = vsel %vm177, %v175, 0.0
        %v180 = vadd.f32 %v178, %v179
        %181 = vadd.xlane.f32.xlu0 %v180
        %v182 = vpop.xlane.xlu0 %181
        %v183 = vmul.f32 %v182, 0.00390625
        %v184 = vld [vmem:[#allocation5] sm:$0xf]
        %v185 = vmul.f32 %v183, %v184
        %vm186 = vcmask 27648
        %v187 = vsel %vm186, %v185, 0.0
        %v188 = vrot.slane %v187, 4
        %v189 = vadd.f32 %v187, %v188
        %v190 = vrot.slane %v189, 2
        %v191 = vadd.f32 %v189, %v190
        %v192 = vrot.slane %v191, 1
        %v193 = vadd.f32 %v191, %v192
        %v194 = vxor.u32 %v193, 2147483648
        %v195 = vmul.f32 %v194, 1.442695
        %v196 = vpow.pop %v195
        %v197 = vadd.f32 %v196, 1.0
        %v198 = vrcp.pop %v197
        %v199 = vmul.f32 1.0, %v198
        %201 = vbcast.lane.b32.xlu0 %v199, 256
        %v202 = vpop.permute.xlu0 %201
        %v205 = vunpack.c.l.s4 839922192
        %v206 = vunpack.c.0.s8 %v205
        %v207 = vlaneseq
        %v208 = vshrl.u32 %v207, 7
        %v209 = vsub.s32 %v206, %v208
        %v210 = vrot.slane %v202, %v209
        %v212 = vmul.f32 %v173, %v210
        %213 = vst [vmem:[%s172] sm:$0xff] %v212
        %s214 = sand.u32 %s75, 1
        %s215 = scalar_lea.sflag [#allocation4], %s214
        %s216 = sand.u32 %s75, 1
        %s217 = smul.addr %s216, 8
        %s218 = scalar_lea.vmem [#allocation7], %s217
        // Predicated region
        $region37: #{tpu_custom_call.1} parent=27 // pred_check
          %p219 = pneg %p85
        $region38: #{tpu_custom_call.1} parent=27 // pred_check_branch
          %221 = sbr.rel (%p219) target = $region40
        $region39: #{tpu_custom_call.1} parent=27 // pred_region
          %s223 = ssub.s32 128, 128
          %224 = vsyncadd %s215, %s223
          %s225 = smul.addr %s20, 2
          %s226 = smul.addr %s225, 64
          %s227 = scalar_lea.hbm %s2, %s226
          %s229 = sshll.u32 %s218, 4
          %s230 = int_to_ptr.vmem [resolvable:$true] %s229
          %232 = dma.vmem_to_hbm [thread:$0]  %s230, 128, %s227, %s215
        $region40: #{tpu_custom_call.1} parent=27 // pred_fallthru
          _
      $region28: #{tpu_custom_call.1} parent=5 // pred_fallthru
        _
      %p233 = scmp.le.s32.totalorder 2, %s15
      // Predicated region
      $region41: #{tpu_custom_call.1} parent=5 // pred_check
        %p234 = pneg %p233
      $region42: #{tpu_custom_call.1} parent=5 // pred_check_branch
        %236 = sbr.rel (%p234) target = $region44
      $region43: #{tpu_custom_call.1} parent=5 // pred_region
        %s237 = ssub.s32 %s15, 2
        // Predicated region
        $region45: #{tpu_custom_call.1} parent=43 // pred_check
          %p238 = pneg %p91
        $region46: #{tpu_custom_call.1} parent=43 // pred_check_branch
          %240 = sbr.rel (%p238) target = $region48
        $region47: #{tpu_custom_call.1} parent=43 // pred_region
          %s241 = sand.u32 %s76, 1
          %s242 = scalar_lea.sflag [#allocation4], %s241
          %s243 = sand.u32 %s76, 1
          %s244 = smul.addr %s243, 8
          %s245 = scalar_lea.vmem [#allocation7], %s244
          %246 = dma.done %s242, 128
        $region48: #{tpu_custom_call.1} parent=43 // pred_fallthru
          _
      $region44: #{tpu_custom_call.1} parent=5 // pred_fallthru
        _
    $region6: #{tpu_custom_call.1} parent=1 // loop_footer
      %s19 = sadd.s32 1, %s15
    $region7: #{tpu_custom_call.1} parent=1 // loop_footer_branch
      %14 = sbr.rel target = $region3
    $region8: #{tpu_custom_call.1} parent=1 // loop_exit
      _
    %247 = vsyncpa [#allocation3], 1
    %s248 = scalar_lea.sflag [#allocation3], 1
    %249 = vsyncpa %s248, 1
    %250 = vsyncpa [#allocation6], 1
    %251 = vsyncpa [#allocation4], 1
    %s252 = scalar_lea.sflag [#allocation4], 1
    %253 = vsyncpa %s252, 1

</llo_original>
